<compile_context>
chip_gen: v6e
topology: v6e:2x2x1
jax: 0.10.0
libtpu: 0.0.40
codegen_flags: <defaults>
</compile_context>

<pallas_src>
import jax
import jax.numpy as jnp
from jax.experimental import pallas as pl
from jax.experimental.pallas import tpu as pltpu

ROWS_PER_SUPER_ROW = 16  # 16 batch rows x 8 features = 128 lanes


def critic_kernel(x_ref, w1_ref, w2_ref, w3_ref, o_ref):
    """One batch tile.

    x_ref : (tbg, 128)  -- 16 batch rows packed per lane-dense super-row
    w1_ref: (128, 128)  -- kron(I16, W1^T)  (block-diagonal)
    w2_ref: (128, 128)  -- kron(I16, W2^T)
    w3_ref: (128, 16)   -- kron(I16, W3^T)
    o_ref : (tbg, 16)   -- 16 scalar critic values per super-row
    """
    x = x_ref[...]
    # Block-diagonal MXU matmuls: each 8-lane group is contracted only with its own
    # W^T block, so this is exactly per-row Linear(8,8) on all 16 rows at once.
    h1 = jnp.tanh(jnp.dot(x, w1_ref[...], preferred_element_type=jnp.float32))
    h2 = jnp.tanh(jnp.dot(h1, w2_ref[...], preferred_element_type=jnp.float32))
    o_ref[...] = jnp.dot(h2, w3_ref[...],
                         preferred_element_type=jnp.float32).astype(o_ref.dtype)


def critic_forward(x, w1, w2, w3, *, block_b=65536,
                   vmem_limit_bytes=40 * 1024 * 1024):
    """Critic MLP forward pass.

    x : (B, 8)  float32, batch-major (torch nn.Linear input convention).
    w1: (8, 8)  torch weight of Linear(8, 8)  -- (out_features, in_features)
    w2: (8, 8)  torch weight of Linear(8, 8)  -- (out_features, in_features)
    w3: (1, 8)  torch weight of Linear(8, 1)  -- (out_features, in_features)
    Returns (B, 1) float32, identical math to the PyTorch module.

    block_b is the batch tile in rows. Tuning guidance (keep a multiple of 128):
      v5e : <= ~96K rows at the default vmem_limit, more if the limit is raised.
      v6e : 128K-256K rows with vmem_limit_bytes ~64-96 MiB.
      v7x : cap around 128K-196K rows (64 MiB physical VMEM).
    """
    B = x.shape[0]
    assert x.shape[1] == 8, "Critic expects 8 input features"

    rem = B % ROWS_PER_SUPER_ROW
    if rem:
        # TODO(synk): batches with B % 16 != 0 pay one extra HBM pass for this pad;
        # the usual power-of-two PPO batches take the zero-copy path below.
        x = jnp.pad(x, ((0, ROWS_PER_SUPER_ROW - rem), (0, 0)))
    B16 = x.shape[0]
    Bg = B16 // ROWS_PER_SUPER_ROW

    # Free, contiguous regroup: 16 batch-major rows -> one 128-lane super-row.
    x2 = x.reshape(Bg, 128)

    # Block-diagonal weights: the layout flip lives inside the MXU contraction.
    dt = x.dtype
    eye16 = jnp.eye(ROWS_PER_SUPER_ROW, dtype=dt)
    w1bd = jnp.kron(eye16, w1.T.astype(dt))   # (128, 128)
    w2bd = jnp.kron(eye16, w2.T.astype(dt))   # (128, 128)
    w3bd = jnp.kron(eye16, w3.T.astype(dt))   # (128, 16)

    # Batch tile in super-rows; multiple of 8 for the sublane constraint.
    tbg_max = max(8, (block_b // ROWS_PER_SUPER_ROW // 8) * 8)
    tbg = Bg if Bg <= tbg_max else tbg_max
    num_tiles = pl.cdiv(Bg, tbg)   # ragged last block handled by Pallas

    out = pl.pallas_call(
        critic_kernel,
        out_shape=jax.ShapeDtypeStruct((Bg, 16), jnp.float32),
        grid_spec=pltpu.PrefetchScalarGridSpec(
            num_scalar_prefetch=0,
            grid=(num_tiles,),
            in_specs=[
                pl.BlockSpec((tbg, 128), lambda i: (i, 0)),  # x tile, pipelined
                pl.BlockSpec((128, 128), lambda i: (0, 0)),  # weights stay resident
                pl.BlockSpec((128, 128), lambda i: (0, 0)),
                pl.BlockSpec((128, 16), lambda i: (0, 0)),
            ],
            out_specs=pl.BlockSpec((tbg, 16), lambda i: (i, 0)),
        ),
        compiler_params=pltpu.CompilerParams(
            # Embarrassingly parallel batch axis -> dual-TC sharding on v7x,
            # neutral on single-TC v5e/v6e.
            dimension_semantics=("parallel",),
            vmem_limit_bytes=vmem_limit_bytes,
        ),
        cost_estimate=pl.CostEstimate(
            flops=4352 * B16,                 # 69632 MXU FLOP per 16-row super-row
            transcendentals=16 * B16,         # 2 x 8 tanh per row
            bytes_accessed=36 * B16 + (2 * 128 * 128 + 128 * 16) * 4,
        ),
    )(x2, w1bd, w2bd, w3bd)

    out = out.reshape(B16, 1)                 # free reshape: (Bg, 16) -> (B16, 1)
    if rem:
        out = out[:B]                         # drop padded rows (tiny output copy)
    return out


def critic_reference(x, w1, w2, w3):
    """Plain-JAX reference with identical math to the PyTorch module."""
    h = jnp.tanh(x @ w1.T)
    h = jnp.tanh(h @ w2.T)
    return h @ w3.T


if __name__ == "__main__":
    key = jax.random.PRNGKey(0)
    kx1, kx2, kx3, kw1, kw2, kw3 = jax.random.split(key, 6)
    bound = 1.0 / jnp.sqrt(8.0)  # torch default init scale (fan_in = 8)
    w1 = jax.random.uniform(kw1, (8, 8), jnp.float32, -bound, bound)
    w2 = jax.random.uniform(kw2, (8, 8), jnp.float32, -bound, bound)
    w3 = jax.random.uniform(kw3, (1, 8), jnp.float32, -bound, bound)

    # Small batch: exercises the B % 16 != 0 pad branch (single grid step).
    x_small = jax.random.normal(kx1, (4, 8), jnp.float32)
    out_small = jax.block_until_ready(critic_forward(x_small, w1, w2, w3))
    ref_small = critic_reference(x_small, w1, w2, w3)
    assert out_small.shape == (4, 1)
    assert jnp.allclose(out_small, ref_small, atol=1e-4, rtol=1e-4)

    # Multi-tile pipelined path with a partial last block: Bg=40, tbg=16 -> 3 steps.
    x_big = jax.random.normal(kx2, (640, 8), jnp.float32)
    out_big = jax.block_until_ready(critic_forward(x_big, w1, w2, w3, block_b=256))
    ref_big = critic_reference(x_big, w1, w2, w3)
    assert out_big.shape == (640, 1)
    assert jnp.allclose(out_big, ref_big, atol=1e-4, rtol=1e-4)

    # Ragged B on the multi-tile path (500 -> padded to 512, 4 grid steps).
    x_rag = jax.random.normal(kx3, (500, 8), jnp.float32)
    out_rag = jax.block_until_ready(critic_forward(x_rag, w1, w2, w3, block_b=128))
    ref_rag = critic_reference(x_rag, w1, w2, w3)
    assert out_rag.shape == (500, 1)
    assert jnp.allclose(out_rag, ref_rag, atol=1e-4, rtol=1e-4)

    print("KERNEL_OK")
</pallas_src>

<mosaic_0001>
module attributes {stable_mosaic.version = 11 : i64} {
  func.func @critic_kernel(%arg0: i32, %arg1: memref<1x128xf32, #tpu.memory_space<vmem>>, %arg2: memref<128x128xf32, #tpu.memory_space<vmem>>, %arg3: memref<128x128xf32, #tpu.memory_space<vmem>>, %arg4: memref<128x16xf32, #tpu.memory_space<vmem>>, %arg5: memref<1x16xf32, #tpu.memory_space<vmem>>) attributes {dimension_semantics = [#tpu.dimension_semantics<parallel>], iteration_bounds = array<i64: 1>, scalar_prefetch = 0 : i64, scratch_operands = 0 : i64, tpu.core_type = #tpu.core_type<tc>, window_params = [{transform_indices = @transform_0, window_bounds = array<i64: 1, 128>}, {pipeline_mode = #tpu.pipeline_mode<synchronous>, transform_indices = @transform_1, window_bounds = array<i64: 128, 128>}, {pipeline_mode = #tpu.pipeline_mode<synchronous>, transform_indices = @transform_2, window_bounds = array<i64: 128, 128>}, {pipeline_mode = #tpu.pipeline_mode<synchronous>, transform_indices = @transform_3, window_bounds = array<i64: 128, 16>}, {transform_indices = @transform_4, window_bounds = array<i64: 1, 16>}]} {
    %c0 = arith.constant 0 : index
    %c0_0 = arith.constant 0 : index
    %0 = vector.load %arg1[%c0, %c0_0] : memref<1x128xf32, #tpu.memory_space<vmem>>, vector<1x128xf32>
    %c0_1 = arith.constant 0 : index
    %c0_2 = arith.constant 0 : index
    %1 = vector.load %arg2[%c0_1, %c0_2] : memref<128x128xf32, #tpu.memory_space<vmem>>, vector<128x128xf32>
    %cst = arith.constant dense<0.000000e+00> : vector<1x128xf32>
    %2 = tpu.matmul %0, %1, %cst {dimension_numbers = #tpu.dot_dimension_numbers<[1], [0], [0], [1], [0, 0, 1, 1], [], []>} : vector<1x128xf32>, vector<128x128xf32>, vector<1x128xf32> -> vector<1x128xf32>
    %3 = math.tanh %2 : vector<1x128xf32>
    %c0_3 = arith.constant 0 : index
    %c0_4 = arith.constant 0 : index
    %4 = vector.load %arg3[%c0_3, %c0_4] : memref<128x128xf32, #tpu.memory_space<vmem>>, vector<128x128xf32>
    %cst_5 = arith.constant dense<0.000000e+00> : vector<1x128xf32>
    %5 = tpu.matmul %3, %4, %cst_5 {dimension_numbers = #tpu.dot_dimension_numbers<[1], [0], [0], [1], [0, 0, 1, 1], [], []>} : vector<1x128xf32>, vector<128x128xf32>, vector<1x128xf32> -> vector<1x128xf32>
    %6 = math.tanh %5 : vector<1x128xf32>
    %c0_6 = arith.constant 0 : index
    %c0_7 = arith.constant 0 : index
    %7 = vector.load %arg4[%c0_6, %c0_7] : memref<128x16xf32, #tpu.memory_space<vmem>>, vector<128x16xf32>
    %cst_8 = arith.constant dense<0.000000e+00> : vector<1x16xf32>
    %8 = tpu.matmul %6, %7, %cst_8 {dimension_numbers = #tpu.dot_dimension_numbers<[1], [0], [0], [1], [0, 0, 1, 1], [], []>} : vector<1x128xf32>, vector<128x16xf32>, vector<1x16xf32> -> vector<1x16xf32>
    %c0_9 = arith.constant 0 : index
    %c0_10 = arith.constant 0 : index
    %9 = vector.load %arg5[%c0_9, %c0_10] : memref<1x16xf32, #tpu.memory_space<vmem>>, vector<1x16xf32>
    tpu.vector_store %arg5[%c0_9, %c0_10], %8 {strides = array<i32>} : memref<1x16xf32, #tpu.memory_space<vmem>>, vector<1x16xf32>,
    return
  }
  func.func @transform_0(%arg0: i32) -> (i32, i32) {
    %c0_i32 = arith.constant 0 : i32
    %c0_i32_0 = arith.constant 0 : i32
    return %arg0, %c0_i32 : i32, i32
  }
  func.func @transform_1(%arg0: i32) -> (i32, i32) {
    %c0_i32 = arith.constant 0 : i32
    %c0_i32_0 = arith.constant 0 : i32
    %c0_i32_1 = arith.constant 0 : i32
    return %c0_i32, %c0_i32_0 : i32, i32
  }
  func.func @transform_2(%arg0: i32) -> (i32, i32) {
    %c0_i32 = arith.constant 0 : i32
    %c0_i32_0 = arith.constant 0 : i32
    %c0_i32_1 = arith.constant 0 : i32
    return %c0_i32, %c0_i32_0 : i32, i32
  }
  func.func @transform_3(%arg0: i32) -> (i32, i32) {
    %c0_i32 = arith.constant 0 : i32
    %c0_i32_0 = arith.constant 0 : i32
    %c0_i32_1 = arith.constant 0 : i32
    return %c0_i32, %c0_i32_0 : i32, i32
  }
  func.func @transform_4(%arg0: i32) -> (i32, i32) {
    %c0_i32 = arith.constant 0 : i32
    %c0_i32_0 = arith.constant 0 : i32
    return %arg0, %c0_i32 : i32, i32
  }
}

</mosaic_0001>

<llo_original>
// kernel: tpu_custom_call.1
$region0: #{tpu_custom_call.1}
  #allocation0 [shape = 'u32[]', space=smem, size = 0x4, offset = 0x4, fixed_abs, tag = 'smem constant byte address 0x4 - core index']
  #allocation1 [shape = 'u32[144,128]{1,0:T(1,128)}', space=vmem, size = 0x12000, scoped, tag = 'internal scratch']
  %s0 = inlined_call_operand.vmem [shape: f32[1,128], index: 0, kind: input, shape index: {}]
  %s1 = inlined_call_operand.vmem [shape: f32[128,128], index: 1, kind: input, shape index: {}]
  %s2 = inlined_call_operand.hbm [shape: f32[128,128], index: 2, kind: input, shape index: {}]
  %s3 = inlined_call_operand.vmem [shape: f32[128,16], index: 3, kind: input, shape index: {}]
  %s4 = inlined_call_operand.hbm [shape: f32[1,16], index: 4, kind: output, shape index: {}]
  %s5 = sld [smem:[#allocation0]]
  $region30: #{tpu_custom_call.1} parent=0
    _
  %s7 = ssub.s32 1, %s5
  %s8 = scalar_select 0, %s7, %s5
  $region1: #{tpu_custom_call.1} parent=0
    #allocation2 [shape = 'u8[65536]{0}', space=vmem, size = 0x10000, scoped, tag = 'input window, operand 2, single buffered']
    #allocation3 [shape = 's32[1]{0}', space=sflag, size = 0x4, scoped, tag = 'scoped memory for tpu_custom_call.1']
    #allocation4 [shape = 's32[1]{0}', space=sflag, size = 0x4, scoped, tag = 'scoped memory for tpu_custom_call.1']
    #allocation5 [shape = 'u8[512]{0}', space=vmem, size = 0x400, scoped, tag = 'output window, operand 0, single buffered']
    %9 = vsyncpa [#allocation3], 0
    %10 = vsyncpa [#allocation4], 0
    // Predicated region
    $region2: #{tpu_custom_call.1} parent=1 // pred_check
      _
    $region3: #{tpu_custom_call.1} parent=1 // pred_check_branch
      %12 = sbr.rel (0) target = $region5
    $region4: #{tpu_custom_call.1} parent=1 // pred_region
      _
    $region5: #{tpu_custom_call.1} parent=1 // pred_fallthru
      _
    // Predicated region
    $region6: #{tpu_custom_call.1} parent=1 // pred_check
      _
    $region7: #{tpu_custom_call.1} parent=1 // pred_check_branch
      %14 = sbr.rel (0) target = $region9
    $region8: #{tpu_custom_call.1} parent=1 // pred_region
      _
    $region9: #{tpu_custom_call.1} parent=1 // pred_fallthru
      _
    // Predicated region
    $region10: #{tpu_custom_call.1} parent=1 // pred_check
      _
    $region11: #{tpu_custom_call.1} parent=1 // pred_check_branch
      %16 = sbr.rel (0) target = $region13
    $region12: #{tpu_custom_call.1} parent=1 // pred_region
      %s18 = ssub.s32 2048, 2048
      %19 = vsyncadd [#allocation3], %s18
      %s20 = sshll.u32 [#allocation2], 4
      %s21 = int_to_ptr.vmem [resolvable:$true] %s20
      %26 = dma.hbm_to_vmem [thread:$0]  %s2, 2048, %s21, [#allocation3], 128, 128, 8
    $region13: #{tpu_custom_call.1} parent=1 // pred_fallthru
      _
    // Predicated region
    $region14: #{tpu_custom_call.1} parent=1 // pred_check
      _
    $region15: #{tpu_custom_call.1} parent=1 // pred_check_branch
      %28 = sbr.rel (0) target = $region17
    $region16: #{tpu_custom_call.1} parent=1 // pred_region
      _
    $region17: #{tpu_custom_call.1} parent=1 // pred_fallthru
      _
    // Predicated region
    $region18: #{tpu_custom_call.1} parent=1 // pred_check
      _
    $region19: #{tpu_custom_call.1} parent=1 // pred_check_branch
      %30 = sbr.rel (0) target = $region21
    $region20: #{tpu_custom_call.1} parent=1 // pred_region
      %31 = dma.done [#allocation3], 2048
    $region21: #{tpu_custom_call.1} parent=1 // pred_fallthru
      _
    %v32 = vld [vmem:[%s0] sm:$0x1]
    %v33 = vld [vmem:[%s1] sm:$0xff]
    %v34 = vld [vmem:[%s1 + $0x8] sm:$0xff]
    %v35 = vld [vmem:[%s1 + $0x10] sm:$0xff]
    %v36 = vld [vmem:[%s1 + $0x18] sm:$0xff]
    %v37 = vld [vmem:[%s1 + $0x20] sm:$0xff]
    %v38 = vld [vmem:[%s1 + $0x28] sm:$0xff]
    %v39 = vld [vmem:[%s1 + $0x30] sm:$0xff]
    %v40 = vld [vmem:[%s1 + $0x38] sm:$0xff]
    %v41 = vld [vmem:[%s1 + $0x40] sm:$0xff]
    %v42 = vld [vmem:[%s1 + $0x48] sm:$0xff]
    %v43 = vld [vmem:[%s1 + $0x50] sm:$0xff]
    %v44 = vld [vmem:[%s1 + $0x58] sm:$0xff]
    %v45 = vld [vmem:[%s1 + $0x60] sm:$0xff]
    %v46 = vld [vmem:[%s1 + $0x68] sm:$0xff]
    %v47 = vld [vmem:[%s1 + $0x70] sm:$0xff]
    %v48 = vld [vmem:[%s1 + $0x78] sm:$0xff]
    %49 = vmatprep.subr.mxu0 0.0
    %50 = vmatpush1.msra.mxu0 %v48
    %51 = vmatprep.subr.mxu0 0.0
    %52 = vmatpush1.msra.mxu0 %v47
    %53 = vmatprep.subr.mxu0 0.0
    %54 = vmatpush1.msra.mxu0 %v46
    %55 = vmatprep.subr.mxu0 0.0
    %56 = vmatpush1.msra.mxu0 %v45
    %57 = vmatprep.subr.mxu0 0.0
    %58 = vmatpush1.msra.mxu0 %v44
    %59 = vmatprep.subr.mxu0 0.0
    %60 = vmatpush1.msra.mxu0 %v43
    %61 = vmatprep.subr.mxu0 0.0
    %62 = vmatpush1.msra.mxu0 %v42
    %63 = vmatprep.subr.mxu0 0.0
    %64 = vmatpush1.msra.mxu0 %v41
    %65 = vmatprep.subr.mxu0 0.0
    %66 = vmatpush1.msra.mxu0 %v40
    %67 = vmatprep.subr.mxu0 0.0
    %68 = vmatpush1.msra.mxu0 %v39
    %69 = vmatprep.subr.mxu0 0.0
    %70 = vmatpush1.msra.mxu0 %v38
    %71 = vmatprep.subr.mxu0 0.0
    %72 = vmatpush1.msra.mxu0 %v37
    %73 = vmatprep.subr.mxu0 0.0
    %74 = vmatpush1.msra.mxu0 %v36
    %75 = vmatprep.subr.mxu0 0.0
    %76 = vmatpush1.msra.mxu0 %v35
    %77 = vmatprep.subr.mxu0 0.0
    %78 = vmatpush1.msra.mxu0 %v34
    %79 = vmatprep.subr.mxu0 0.0
    %80 = vmatpush1.msra.mxu0 %v33
    %81 = vmatprep.subr.mxu0 0.0
    %82 = vmatpush2.msra.mxu0 0.0
    %83 = vmatprep.subr.mxu0 0.0
    %84 = vmatpush2.msra.mxu0 0.0
    %85 = vmatprep.subr.mxu0 0.0
    %86 = vmatpush2.msra.mxu0 0.0
    %87 = vmatprep.subr.mxu0 0.0
    %88 = vmatpush2.msra.mxu0 0.0
    %89 = vmatprep.subr.mxu0 0.0
    %90 = vmatpush2.msra.mxu0 0.0
    %91 = vmatprep.subr.mxu0 0.0
    %92 = vmatpush2.msra.mxu0 0.0
    %93 = vmatprep.subr.mxu0 0.0
    %94 = vmatpush2.msra.mxu0 0.0
    %95 = vmatprep.subr.mxu0 0.0
    %96 = vmatpush2.msra.mxu0 0.0
    %97 = vmatprep.subr.mxu0 0.0
    %98 = vmatpush2.msra.mxu0 0.0
    %99 = vmatprep.subr.mxu0 0.0
    %100 = vmatpush2.msra.mxu0 0.0
    %101 = vmatprep.subr.mxu0 0.0
    %102 = vmatpush2.msra.mxu0 0.0
    %103 = vmatprep.subr.mxu0 0.0
    %104 = vmatpush2.msra.mxu0 0.0
    %105 = vmatprep.subr.mxu0 0.0
    %106 = vmatpush2.msra.mxu0 0.0
    %107 = vmatprep.subr.mxu0 0.0
    %108 = vmatpush2.msra.mxu0 0.0
    %109 = vmatprep.subr.mxu0 0.0
    %110 = vmatpush2.msra.mxu0 0.0
    %111 = vmatprep.subr.mxu0 0.0
    %112 = vmatpush2.msra.mxu0 0.0
    %113 = vmatprep.mubr.f32.mxu0 0.0
    %114 = vmatmul.mubr.f32.gmra.mxu0 %v32
    %v115 = vpop.f32.mrf.mxu0
    %v116 = vadd.f32 0.0, %v115
    %v117 = vpop.f32.mrf.mxu0
    %118 = vdwg.mxu0
    %v119 = vtanh.pop %v116
    %v120 = vld [vmem:[#allocation2] sm:$0xff]
    %v121 = vld [vmem:[#allocation2 + $0x8] sm:$0xff]
    %v122 = vld [vmem:[#allocation2 + $0x10] sm:$0xff]
    %v123 = vld [vmem:[#allocation2 + $0x18] sm:$0xff]
    %v124 = vld [vmem:[#allocation2 + $0x20] sm:$0xff]
    %v125 = vld [vmem:[#allocation2 + $0x28] sm:$0xff]
    %v126 = vld [vmem:[#allocation2 + $0x30] sm:$0xff]
    %v127 = vld [vmem:[#allocation2 + $0x38] sm:$0xff]
    %v128 = vld [vmem:[#allocation2 + $0x40] sm:$0xff]
    %v129 = vld [vmem:[#allocation2 + $0x48] sm:$0xff]
    %v130 = vld [vmem:[#allocation2 + $0x50] sm:$0xff]
    %v131 = vld [vmem:[#allocation2 + $0x58] sm:$0xff]
    %v132 = vld [vmem:[#allocation2 + $0x60] sm:$0xff]
    %v133 = vld [vmem:[#allocation2 + $0x68] sm:$0xff]
    %v134 = vld [vmem:[#allocation2 + $0x70] sm:$0xff]
    %v135 = vld [vmem:[#allocation2 + $0x78] sm:$0xff]
    %136 = vmatprep.subr.mxu0 0.0
    %137 = vmatpush1.msra.mxu0 %v135
    %138 = vmatprep.subr.mxu0 0.0
    %139 = vmatpush1.msra.mxu0 %v134
    %140 = vmatprep.subr.mxu0 0.0
    %141 = vmatpush1.msra.mxu0 %v133
    %142 = vmatprep.subr.mxu0 0.0
    %143 = vmatpush1.msra.mxu0 %v132
    %144 = vmatprep.subr.mxu0 0.0
    %145 = vmatpush1.msra.mxu0 %v131
    %146 = vmatprep.subr.mxu0 0.0
    %147 = vmatpush1.msra.mxu0 %v130
    %148 = vmatprep.subr.mxu0 0.0
    %149 = vmatpush1.msra.mxu0 %v129
    %150 = vmatprep.subr.mxu0 0.0
    %151 = vmatpush1.msra.mxu0 %v128
    %152 = vmatprep.subr.mxu0 0.0
    %153 = vmatpush1.msra.mxu0 %v127
    %154 = vmatprep.subr.mxu0 0.0
    %155 = vmatpush1.msra.mxu0 %v126
    %156 = vmatprep.subr.mxu0 0.0
    %157 = vmatpush1.msra.mxu0 %v125
    %158 = vmatprep.subr.mxu0 0.0
    %159 = vmatpush1.msra.mxu0 %v124
    %160 = vmatprep.subr.mxu0 0.0
    %161 = vmatpush1.msra.mxu0 %v123
    %162 = vmatprep.subr.mxu0 0.0
    %163 = vmatpush1.msra.mxu0 %v122
    %164 = vmatprep.subr.mxu0 0.0
    %165 = vmatpush1.msra.mxu0 %v121
    %166 = vmatprep.subr.mxu0 0.0
    %167 = vmatpush1.msra.mxu0 %v120
    %168 = vmatprep.subr.mxu0 0.0
    %169 = vmatpush2.msra.mxu0 0.0
    %170 = vmatprep.subr.mxu0 0.0
    %171 = vmatpush2.msra.mxu0 0.0
    %172 = vmatprep.subr.mxu0 0.0
    %173 = vmatpush2.msra.mxu0 0.0
    %174 = vmatprep.subr.mxu0 0.0
    %175 = vmatpush2.msra.mxu0 0.0
    %176 = vmatprep.subr.mxu0 0.0
    %177 = vmatpush2.msra.mxu0 0.0
    %178 = vmatprep.subr.mxu0 0.0
    %179 = vmatpush2.msra.mxu0 0.0
    %180 = vmatprep.subr.mxu0 0.0
    %181 = vmatpush2.msra.mxu0 0.0
    %182 = vmatprep.subr.mxu0 0.0
    %183 = vmatpush2.msra.mxu0 0.0
    %184 = vmatprep.subr.mxu0 0.0
    %185 = vmatpush2.msra.mxu0 0.0
    %186 = vmatprep.subr.mxu0 0.0
    %187 = vmatpush2.msra.mxu0 0.0
    %188 = vmatprep.subr.mxu0 0.0
    %189 = vmatpush2.msra.mxu0 0.0
    %190 = vmatprep.subr.mxu0 0.0
    %191 = vmatpush2.msra.mxu0 0.0
    %192 = vmatprep.subr.mxu0 0.0
    %193 = vmatpush2.msra.mxu0 0.0
    %194 = vmatprep.subr.mxu0 0.0
    %195 = vmatpush2.msra.mxu0 0.0
    %196 = vmatprep.subr.mxu0 0.0
    %197 = vmatpush2.msra.mxu0 0.0
    %198 = vmatprep.subr.mxu0 0.0
    %199 = vmatpush2.msra.mxu0 0.0
    %200 = vmatprep.mubr.f32.mxu0 0.0
    %201 = vmatmul.mubr.f32.gmra.mxu0 %v119
    %v202 = vpop.f32.mrf.mxu0
    %v203 = vadd.f32 0.0, %v202
    %v204 = vpop.f32.mrf.mxu0
    %205 = vdwg.mxu0
    %v206 = vtanh.pop %v203
    %v207 = vld [vmem:[%s3] sm:$0xff]
    %v208 = vld [vmem:[%s3 + $0x8] sm:$0xff]
    %v209 = vld [vmem:[%s3 + $0x10] sm:$0xff]
    %v210 = vld [vmem:[%s3 + $0x18] sm:$0xff]
    %v211 = vld [vmem:[%s3 + $0x20] sm:$0xff]
    %v212 = vld [vmem:[%s3 + $0x28] sm:$0xff]
    %v213 = vld [vmem:[%s3 + $0x30] sm:$0xff]
    %v214 = vld [vmem:[%s3 + $0x38] sm:$0xff]
    %v215 = vld [vmem:[%s3 + $0x40] sm:$0xff]
    %v216 = vld [vmem:[%s3 + $0x48] sm:$0xff]
    %v217 = vld [vmem:[%s3 + $0x50] sm:$0xff]
    %v218 = vld [vmem:[%s3 + $0x58] sm:$0xff]
    %v219 = vld [vmem:[%s3 + $0x60] sm:$0xff]
    %v220 = vld [vmem:[%s3 + $0x68] sm:$0xff]
    %v221 = vld [vmem:[%s3 + $0x70] sm:$0xff]
    %v222 = vld [vmem:[%s3 + $0x78] sm:$0xff]
    %223 = vmatprep.subr.mxu0 0.0
    %224 = vmatpush1.msra.mxu0 %v222
    %225 = vmatprep.subr.mxu0 0.0
    %226 = vmatpush1.msra.mxu0 %v221
    %227 = vmatprep.subr.mxu0 0.0
    %228 = vmatpush1.msra.mxu0 %v220
    %229 = vmatprep.subr.mxu0 0.0
    %230 = vmatpush1.msra.mxu0 %v219
    %231 = vmatprep.subr.mxu0 0.0
    %232 = vmatpush1.msra.mxu0 %v218
    %233 = vmatprep.subr.mxu0 0.0
    %234 = vmatpush1.msra.mxu0 %v217
    %235 = vmatprep.subr.mxu0 0.0
    %236 = vmatpush1.msra.mxu0 %v216
    %237 = vmatprep.subr.mxu0 0.0
    %238 = vmatpush1.msra.mxu0 %v215
    %239 = vmatprep.subr.mxu0 0.0
    %240 = vmatpush1.msra.mxu0 %v214
    %241 = vmatprep.subr.mxu0 0.0
    %242 = vmatpush1.msra.mxu0 %v213
    %243 = vmatprep.subr.mxu0 0.0
    %244 = vmatpush1.msra.mxu0 %v212
    %245 = vmatprep.subr.mxu0 0.0
    %246 = vmatpush1.msra.mxu0 %v211
    %247 = vmatprep.subr.mxu0 0.0
    %248 = vmatpush1.msra.mxu0 %v210
    %249 = vmatprep.subr.mxu0 0.0
    %250 = vmatpush1.msra.mxu0 %v209
    %251 = vmatprep.subr.mxu0 0.0
    %252 = vmatpush1.msra.mxu0 %v208
    %253 = vmatprep.subr.mxu0 0.0
    %254 = vmatpush1.msra.mxu0 %v207
    %255 = vmatprep.subr.mxu0 0.0
    %256 = vmatpush2.msra.mxu0 0.0
    %257 = vmatprep.subr.mxu0 0.0
    %258 = vmatpush2.msra.mxu0 0.0
    %259 = vmatprep.subr.mxu0 0.0
    %260 = vmatpush2.msra.mxu0 0.0
    %261 = vmatprep.subr.mxu0 0.0
    %262 = vmatpush2.msra.mxu0 0.0
    %263 = vmatprep.subr.mxu0 0.0
    %264 = vmatpush2.msra.mxu0 0.0
    %265 = vmatprep.subr.mxu0 0.0
    %266 = vmatpush2.msra.mxu0 0.0
    %267 = vmatprep.subr.mxu0 0.0
    %268 = vmatpush2.msra.mxu0 0.0
    %269 = vmatprep.subr.mxu0 0.0
    %270 = vmatpush2.msra.mxu0 0.0
    %271 = vmatprep.subr.mxu0 0.0
    %272 = vmatpush2.msra.mxu0 0.0
    %273 = vmatprep.subr.mxu0 0.0
    %274 = vmatpush2.msra.mxu0 0.0
    %275 = vmatprep.subr.mxu0 0.0
    %276 = vmatpush2.msra.mxu0 0.0
    %277 = vmatprep.subr.mxu0 0.0
    %278 = vmatpush2.msra.mxu0 0.0
    %279 = vmatprep.subr.mxu0 0.0
    %280 = vmatpush2.msra.mxu0 0.0
    %281 = vmatprep.subr.mxu0 0.0
    %282 = vmatpush2.msra.mxu0 0.0
    %283 = vmatprep.subr.mxu0 0.0
    %284 = vmatpush2.msra.mxu0 0.0
    %285 = vmatprep.subr.mxu0 0.0
    %286 = vmatpush2.msra.mxu0 0.0
    %287 = vmatprep.mubr.f32.mxu0 0.0
    %288 = vmatmul.mubr.f32.gmra.mxu0 %v206
    %v289 = vpop.f32.mrf.mxu0
    %v290 = vadd.f32 0.0, %v289
    %v291 = vpop.f32.mrf.mxu0
    %292 = vdwg.mxu0
    %vm293 = vcmask 122880
    %294 = vst.msk [vmem:[#allocation5] sm:$0x1] %vm293, %v290
    // Predicated region
    $region22: #{tpu_custom_call.1} parent=1 // pred_check
      _
    $region23: #{tpu_custom_call.1} parent=1 // pred_check_branch
      %296 = sbr.rel (0) target = $region25
    $region24: #{tpu_custom_call.1} parent=1 // pred_region
      %s298 = ssub.s32 16, 16
      %299 = vsyncadd [#allocation4], %s298
      %s301 = sshll.u32 [#allocation5], 4
      %s302 = int_to_ptr.vmem [resolvable:$true] %s301
      %304 = dma.vmem_to_hbm [thread:$0]  %s302, 16, %s4, [#allocation4]
    $region25: #{tpu_custom_call.1} parent=1 // pred_fallthru
      _
    // Predicated region
    $region26: #{tpu_custom_call.1} parent=1 // pred_check
      _
    $region27: #{tpu_custom_call.1} parent=1 // pred_check_branch
      %306 = sbr.rel (0) target = $region29
    $region28: #{tpu_custom_call.1} parent=1 // pred_region
      %307 = dma.done [#allocation4], 16
    $region29: #{tpu_custom_call.1} parent=1 // pred_fallthru
      _
    %308 = vsyncpa [#allocation3], 1
    %309 = vsyncpa [#allocation4], 1

</llo_original>
